<compile_context>
chip_gen: v7x
topology: tpu7x:2x2x1
jax: 0.10.0
libtpu: 0.0.40
codegen_flags: <defaults>
</compile_context>

<pallas_src>
import functools

import jax
import jax.numpy as jnp
from jax.experimental import pallas as pl
from jax.experimental.pallas import tpu as pltpu


# ------------------------------ Pallas kernel -------------------------------

def _encoder_lstm_kernel(x_ref, *args, num_layers, hidden):
    """One (batch_chunk, time_step) grid point of the fused LSTM forward.

    Arg layout: x_ref (1, NB, E) pipelined embedding slab; then per layer
    (W_x HBM, W_h HBM, bias VMEM); then outputs h_out/c_out (L, NB, H); then
    scratch: per-layer (W_x VMEM, W_h VMEM), h_state, c_state.
    """
    L, H = num_layers, hidden

    w_hbm = [(args[3 * l + 0], args[3 * l + 1]) for l in range(L)]   # HBM refs
    b_refs = [args[3 * l + 2] for l in range(L)]                     # (1, 4H)
    h_out_ref = args[3 * L + 0]                                      # (L, NB, H)
    c_out_ref = args[3 * L + 1]
    scratch = args[3 * L + 2:]
    w_vmem = [(scratch[2 * l + 0], scratch[2 * l + 1]) for l in range(L)]
    h_state = scratch[2 * L + 0]                                     # (L, NB, H)
    c_state = scratch[2 * L + 1]

    t = pl.program_id(1)

    @pl.when(t == 0)
    def _init():
        # Stage never-changing weights HBM -> single-buffered VMEM once per
        # batch chunk (megacore-safe: every core sees t == 0 for its chunks),
        # and zero the recurrent state.
        for l in range(L):
            pltpu.sync_copy(w_hbm[l][0], w_vmem[l][0])
            pltpu.sync_copy(w_hbm[l][1], w_vmem[l][1])
        h_state[...] = jnp.zeros_like(h_state)
        c_state[...] = jnp.zeros_like(c_state)

    x = x_ref[0]                                  # (NB, E) f32, this step's rows
    nb = x.shape[0]

    # g-band (cell-candidate) lane mask: layer-invariant, computed once per step.
    lane = jax.lax.broadcasted_iota(jnp.int32, (nb, 4 * H), 1)
    g_band = (lane >= 2 * H) & (lane < 3 * H)

    for l in range(L):
        wx = w_vmem[l][0][...]                    # (in_l, 4H)  MXU dtype
        wh = w_vmem[l][1][...]                    # (H, 4H)
        b = b_refs[l][...]                        # (1, 4H)     f32
        h_prev = h_state[l]                       # (NB, H)     f32
        c_prev = c_state[l]

        # Split-K accumulation instead of concat([x, h]) @ W_cat.
        gates = jnp.dot(x.astype(wx.dtype), wx,
                        preferred_element_type=jnp.float32)
        gates = gates + jnp.dot(h_prev.astype(wh.dtype), wh,
                                preferred_element_type=jnp.float32)
        gates = gates + b                         # (NB, 4H) f32

        # Single tanh pass: i/f/o columns of W/b carry a folded 0.5 pre-scale,
        # so sigmoid(z) == 0.5 * tanh(z/2) + 0.5.  PyTorch gate order [i,f,g,o].
        tg = jnp.tanh(gates)
        act = jnp.where(g_band, tg, 0.5 * tg + 0.5)

        i_g = act[:, 0 * H:1 * H]
        f_g = act[:, 1 * H:2 * H]
        g_g = act[:, 2 * H:3 * H]
        o_g = act[:, 3 * H:4 * H]
        # TODO(synk): at H < 128 these slices / state stores run at <= 25%
        # lane utilization; pad H to a multiple of 128 at realistic sizes.

        c_new = f_g * c_prev + i_g * g_g
        h_new = o_g * jnp.tanh(c_new)
        c_state[l] = c_new
        h_state[l] = h_new
        x = h_new                                 # input to the next layer

    @pl.when(t == pl.num_programs(1) - 1)
    def _finalize():
        h_out_ref[...] = h_state[...]
        c_out_ref[...] = c_state[...]


# --------------------------- Module-level wrapper ----------------------------

def encoder_lstm_forward(params, tokens, *, batch_chunk=None):
    """EncoderLSTM.forward: tokens (T, N) int32 -> (hidden, cell), each (L, N, H)."""
    T, N = tokens.shape
    E = params["embedding"].shape[1]
    L = len(params["layers"])
    H = params["layers"][0]["b"].shape[-1] // 4
    NB = N if batch_chunk is None else batch_chunk
    assert N % NB == 0, "batch must divide evenly into batch chunks"
    num_chunks = N // NB

    # Embedding gather (+ eval-mode dropout = identity) outside the kernel;
    # the per-step (1, NB, E) slabs are auto-pipelined into VMEM below.
    x_emb = jnp.take(params["embedding"], tokens, axis=0)        # (T, N, E) f32

    args = [x_emb]
    in_specs = [pl.BlockSpec((1, NB, E), lambda b, t: (t, b, 0))]
    scratch_shapes = []
    for lp in params["layers"]:
        args += [lp["w_x"], lp["w_h"], lp["b"]]
        in_specs += [
            pl.BlockSpec(memory_space=pl.ANY),                   # W_x stays in HBM
            pl.BlockSpec(memory_space=pl.ANY),                   # W_h stays in HBM
            pl.BlockSpec(lp["b"].shape, lambda b, t: (0, 0)),    # tiny bias in VMEM
        ]
        scratch_shapes += [pltpu.VMEM(lp["w_x"].shape, lp["w_x"].dtype),
                           pltpu.VMEM(lp["w_h"].shape, lp["w_h"].dtype)]
    scratch_shapes += [pltpu.VMEM((L, NB, H), jnp.float32),      # h state
                       pltpu.VMEM((L, NB, H), jnp.float32)]      # c state

    kernel = functools.partial(_encoder_lstm_kernel, num_layers=L, hidden=H)

    grid_spec = pltpu.PrefetchScalarGridSpec(
        num_scalar_prefetch=0,
        grid=(num_chunks, T),
        in_specs=in_specs,
        out_specs=[pl.BlockSpec((L, NB, H), lambda b, t: (0, b, 0)),
                   pl.BlockSpec((L, NB, H), lambda b, t: (0, b, 0))],
        scratch_shapes=scratch_shapes,
    )

    h, c = pl.pallas_call(
        kernel,
        grid_spec=grid_spec,
        out_shape=(jax.ShapeDtypeStruct((L, N, H), jnp.float32),
                   jax.ShapeDtypeStruct((L, N, H), jnp.float32)),
        compiler_params=pltpu.CompilerParams(
            # Batch chunks are independent -> "parallel" (v7x megacore);
            # the time recurrence is sequential -> "arbitrary".
            dimension_semantics=("parallel", "arbitrary")),
    )(*args)
    return h, c


# ------------------------------- Parameters ----------------------------------

def init_encoder_params(key, input_size, embedding_size, hidden_size,
                        num_layers, mxu_dtype=jnp.bfloat16):
    """Synthetic parameters, pre-transformed for the kernel.

    For each layer (PyTorch layout w_ih (4H,in), w_hh (4H,H), b_ih, b_hh):
        w_x = (w_ih.T * s), w_h = (w_hh.T * s), b = (b_ih + b_hh) * s
    where s = 0.5 on the i/f/o gate columns and 1.0 on the g columns, so the
    kernel uses sigmoid(z) = 0.5*tanh(z/2) + 0.5 with a single tanh pass.
    Raw f32 weights are kept for the PyTorch-style cross-check.
    """
    H = hidden_size
    keys = jax.random.split(key, 1 + 4 * num_layers)
    col = jnp.arange(4 * H)
    scale = jnp.where((col >= 2 * H) & (col < 3 * H), 1.0, 0.5).astype(jnp.float32)
    params = {
        "embedding": jax.random.normal(
            keys[0], (input_size, embedding_size), jnp.float32) * 0.1,
        "layers": [],
    }
    for l in range(num_layers):
        in_dim = embedding_size if l == 0 else hidden_size
        k = keys[1 + 4 * l: 1 + 4 * (l + 1)]
        w_ih = jax.random.normal(k[0], (4 * H, in_dim), jnp.float32) * 0.1
        w_hh = jax.random.normal(k[1], (4 * H, H), jnp.float32) * 0.1
        b_ih = jax.random.normal(k[2], (4 * H,), jnp.float32) * 0.1
        b_hh = jax.random.normal(k[3], (4 * H,), jnp.float32) * 0.1
        params["layers"].append({
            "w_x": (w_ih.T * scale[None, :]).astype(mxu_dtype),   # (in_dim, 4H)
            "w_h": (w_hh.T * scale[None, :]).astype(mxu_dtype),   # (H, 4H)
            "b": ((b_ih + b_hh) * scale)[None, :],                # (1, 4H) f32
            "raw": {"w_ih": w_ih, "w_hh": w_hh, "b_ih": b_ih, "b_hh": b_hh},
        })
    return params


# ------------------------------- References ----------------------------------

def encoder_lstm_reference(params, tokens):
    """Pure-JAX reference with the kernel's exact math (folded scale, one tanh)."""
    T, N = tokens.shape
    L = len(params["layers"])
    H = params["layers"][0]["b"].shape[-1] // 4
    emb = jnp.take(params["embedding"], tokens, axis=0)           # (T, N, E)
    h = [jnp.zeros((N, H), jnp.float32) for _ in range(L)]
    c = [jnp.zeros((N, H), jnp.float32) for _ in range(L)]
    for t in range(T):
        x = emb[t]
        for l in range(L):
            lp = params["layers"][l]
            gates = (jnp.dot(x.astype(lp["w_x"].dtype), lp["w_x"],
                             preferred_element_type=jnp.float32)
                     + jnp.dot(h[l].astype(lp["w_h"].dtype), lp["w_h"],
                               preferred_element_type=jnp.float32)
                     + lp["b"])
            tg = jnp.tanh(gates)
            i_g = 0.5 * tg[:, 0 * H:1 * H] + 0.5
            f_g = 0.5 * tg[:, 1 * H:2 * H] + 0.5
            g_g = tg[:, 2 * H:3 * H]
            o_g = 0.5 * tg[:, 3 * H:4 * H] + 0.5
            c[l] = f_g * c[l] + i_g * g_g
            h[l] = o_g * jnp.tanh(c[l])
            x = h[l]
    return jnp.stack(h, axis=0), jnp.stack(c, axis=0)


def encoder_lstm_reference_pytorch(params, tokens):
    """Literal nn.LSTM math (sigmoid/tanh) from the raw, unscaled f32 weights."""
    T, N = tokens.shape
    L = len(params["layers"])
    H = params["layers"][0]["b"].shape[-1] // 4
    emb = jnp.take(params["embedding"], tokens, axis=0)
    h = [jnp.zeros((N, H), jnp.float32) for _ in range(L)]
    c = [jnp.zeros((N, H), jnp.float32) for _ in range(L)]
    for t in range(T):
        x = emb[t]
        for l in range(L):
            r = params["layers"][l]["raw"]
            z = x @ r["w_ih"].T + h[l] @ r["w_hh"].T + r["b_ih"] + r["b_hh"]
            i_g = jax.nn.sigmoid(z[:, 0 * H:1 * H])
            f_g = jax.nn.sigmoid(z[:, 1 * H:2 * H])
            g_g = jnp.tanh(z[:, 2 * H:3 * H])
            o_g = jax.nn.sigmoid(z[:, 3 * H:4 * H])
            c[l] = f_g * c[l] + i_g * g_g
            h[l] = o_g * jnp.tanh(c[l])
            x = h[l]
    return jnp.stack(h, axis=0), jnp.stack(c, axis=0)


# ---------------------------------- Main -------------------------------------

if __name__ == "__main__":
    input_size = 64        # source vocab (embedding rows)
    embedding_size = 32
    hidden_size = 32
    num_layers = 2
    seq_len = 8
    batch = 16
    batch_chunk = 8        # 2 chunks -> exercises the "parallel" batch grid axis

    root = jax.random.PRNGKey(0)
    k_par, k_tok = jax.random.split(root, 2)
    tokens = jax.random.randint(k_tok, (seq_len, batch), 0, input_size,
                                jnp.int32)

    # Tolerances: the single-tanh / folded-scale / split-K rewrites are exact
    # reorderings; the residual error vs the JAX reference comes from the MXU
    # matmul passes (f32 via bf16 passes; bf16 operands for the bf16 config).
    for mxu_dtype, tol in ((jnp.float32, 1e-3), (jnp.bfloat16, 2e-3)):
        params = init_encoder_params(k_par, input_size, embedding_size,
                                     hidden_size, num_layers,
                                     mxu_dtype=mxu_dtype)

        h, c = encoder_lstm_forward(params, tokens, batch_chunk=batch_chunk)
        jax.block_until_ready((h, c))

        assert h.shape == (num_layers, batch, hidden_size)
        assert c.shape == (num_layers, batch, hidden_size)

        h_ref, c_ref = encoder_lstm_reference(params, tokens)
        err = max(float(jnp.max(jnp.abs(h - h_ref))),
                  float(jnp.max(jnp.abs(c - c_ref))))
        assert err < tol, f"[{mxu_dtype.__name__}] max abs error vs reference: {err}"

        if mxu_dtype == jnp.float32:
            # Validate the folded-scale / single-tanh rewrite against the
            # literal nn.LSTM (sigmoid/tanh) formulation on raw f32 weights.
            h_pt, c_pt = encoder_lstm_reference_pytorch(params, tokens)
            err_pt = max(float(jnp.max(jnp.abs(h - h_pt))),
                         float(jnp.max(jnp.abs(c - c_pt))))
            assert err_pt < 2e-3, f"max abs error vs PyTorch-style ref: {err_pt}"

    print("KERNEL_OK")
</pallas_src>

<mosaic_0001>
module attributes {stable_mosaic.version = 11 : i64} {
  func.func @_encoder_lstm_kernel(%arg0: i32, %arg1: i32, %arg2: memref<1x8x32xf32, #tpu.memory_space<vmem>>, %arg3: memref<32x128xf32, #tpu.memory_space<any>>, %arg4: memref<32x128xf32, #tpu.memory_space<any>>, %arg5: memref<1x128xf32, #tpu.memory_space<vmem>>, %arg6: memref<32x128xf32, #tpu.memory_space<any>>, %arg7: memref<32x128xf32, #tpu.memory_space<any>>, %arg8: memref<1x128xf32, #tpu.memory_space<vmem>>, %arg9: memref<2x8x32xf32, #tpu.memory_space<vmem>>, %arg10: memref<2x8x32xf32, #tpu.memory_space<vmem>>, %arg11: memref<32x128xf32, #tpu.memory_space<vmem>>, %arg12: memref<32x128xf32, #tpu.memory_space<vmem>>, %arg13: memref<32x128xf32, #tpu.memory_space<vmem>>, %arg14: memref<32x128xf32, #tpu.memory_space<vmem>>, %arg15: memref<2x8x32xf32, #tpu.memory_space<vmem>>, %arg16: memref<2x8x32xf32, #tpu.memory_space<vmem>>) attributes {dimension_semantics = [#tpu.dimension_semantics<parallel>, #tpu.dimension_semantics<arbitrary>], iteration_bounds = array<i64: 2, 8>, scalar_prefetch = 0 : i64, scratch_operands = 6 : i64, tpu.core_type = #tpu.core_type<tc>, window_params = [{transform_indices = @transform_0, window_bounds = array<i64: 1, 8, 32>}, {}, {}, {pipeline_mode = #tpu.pipeline_mode<synchronous>, transform_indices = @transform_3, window_bounds = array<i64: 1, 128>}, {}, {}, {pipeline_mode = #tpu.pipeline_mode<synchronous>, transform_indices = @transform_6, window_bounds = array<i64: 1, 128>}, {transform_indices = @transform_7, window_bounds = array<i64: 2, 8, 32>}, {transform_indices = @transform_8, window_bounds = array<i64: 2, 8, 32>}]} {
    %c0_i32 = arith.constant 0 : i32
    %0 = arith.cmpi eq, %arg1, %c0_i32 : i32
    %1 = arith.extui %0 : i1 to i32
    %c0_i32_0 = arith.constant 0 : i32
    %2 = arith.cmpi ne, %1, %c0_i32_0 : i32
    scf.if %2 {
      "tpu.region"() ({
        %84 = tpu.sem_alloc : memref<!tpu.dma_semaphore, #tpu.memory_space<semaphore_mem>>
        tpu.enqueue_dma source(%arg3 : memref<32x128xf32, #tpu.memory_space<any>>) target(%arg11 : memref<32x128xf32, #tpu.memory_space<vmem>>) target_semaphore(%84 : memref<!tpu.dma_semaphore, #tpu.memory_space<semaphore_mem>>)
        tpu.wait_dma2 semaphore(%84 : memref<!tpu.dma_semaphore, #tpu.memory_space<semaphore_mem>>) src(%arg3 : memref<32x128xf32, #tpu.memory_space<any>>) dst(%arg11 : memref<32x128xf32, #tpu.memory_space<vmem>>)
        tpu.yield
      }) : () -> ()
      "tpu.region"() ({
        %84 = tpu.sem_alloc : memref<!tpu.dma_semaphore, #tpu.memory_space<semaphore_mem>>
        tpu.enqueue_dma source(%arg4 : memref<32x128xf32, #tpu.memory_space<any>>) target(%arg12 : memref<32x128xf32, #tpu.memory_space<vmem>>) target_semaphore(%84 : memref<!tpu.dma_semaphore, #tpu.memory_space<semaphore_mem>>)
        tpu.wait_dma2 semaphore(%84 : memref<!tpu.dma_semaphore, #tpu.memory_space<semaphore_mem>>) src(%arg4 : memref<32x128xf32, #tpu.memory_space<any>>) dst(%arg12 : memref<32x128xf32, #tpu.memory_space<vmem>>)
        tpu.yield
      }) : () -> ()
      "tpu.region"() ({
        %84 = tpu.sem_alloc : memref<!tpu.dma_semaphore, #tpu.memory_space<semaphore_mem>>
        tpu.enqueue_dma source(%arg6 : memref<32x128xf32, #tpu.memory_space<any>>) target(%arg13 : memref<32x128xf32, #tpu.memory_space<vmem>>) target_semaphore(%84 : memref<!tpu.dma_semaphore, #tpu.memory_space<semaphore_mem>>)
        tpu.wait_dma2 semaphore(%84 : memref<!tpu.dma_semaphore, #tpu.memory_space<semaphore_mem>>) src(%arg6 : memref<32x128xf32, #tpu.memory_space<any>>) dst(%arg13 : memref<32x128xf32, #tpu.memory_space<vmem>>)
        tpu.yield
      }) : () -> ()
      "tpu.region"() ({
        %84 = tpu.sem_alloc : memref<!tpu.dma_semaphore, #tpu.memory_space<semaphore_mem>>
        tpu.enqueue_dma source(%arg7 : memref<32x128xf32, #tpu.memory_space<any>>) target(%arg14 : memref<32x128xf32, #tpu.memory_space<vmem>>) target_semaphore(%84 : memref<!tpu.dma_semaphore, #tpu.memory_space<semaphore_mem>>)
        tpu.wait_dma2 semaphore(%84 : memref<!tpu.dma_semaphore, #tpu.memory_space<semaphore_mem>>) src(%arg7 : memref<32x128xf32, #tpu.memory_space<any>>) dst(%arg14 : memref<32x128xf32, #tpu.memory_space<vmem>>)
        tpu.yield
      }) : () -> ()
      %cst_46 = arith.constant 0.000000e+00 : f32
      %80 = vector.broadcast %cst_46 : f32 to vector<2x8x32xf32>
      %c0_47 = arith.constant 0 : index
      %c0_48 = arith.constant 0 : index
      %c0_49 = arith.constant 0 : index
      %81 = vector.load %arg15[%c0_47, %c0_48, %c0_49] : memref<2x8x32xf32, #tpu.memory_space<vmem>>, vector<2x8x32xf32>
      tpu.vector_store %arg15[%c0_47, %c0_48, %c0_49], %80 {strides = array<i32>} : memref<2x8x32xf32, #tpu.memory_space<vmem>>, vector<2x8x32xf32>,
      %cst_50 = arith.constant 0.000000e+00 : f32
      %82 = vector.broadcast %cst_50 : f32 to vector<2x8x32xf32>
      %c0_51 = arith.constant 0 : index
      %c0_52 = arith.constant 0 : index
      %c0_53 = arith.constant 0 : index
      %83 = vector.load %arg16[%c0_51, %c0_52, %c0_53] : memref<2x8x32xf32, #tpu.memory_space<vmem>>, vector<2x8x32xf32>
      tpu.vector_store %arg16[%c0_51, %c0_52, %c0_53], %82 {strides = array<i32>} : memref<2x8x32xf32, #tpu.memory_space<vmem>>, vector<2x8x32xf32>,
    } else {
    }
    %c0 = arith.constant 0 : index
    %c0_1 = arith.constant 0 : index
    %c0_2 = arith.constant 0 : index
    %3 = vector.load %arg2[%c0, %c0_1, %c0_2] : memref<1x8x32xf32, #tpu.memory_space<vmem>>, vector<1x8x32xf32>
    %4 = vector.shape_cast %3 : vector<1x8x32xf32> to vector<8x32xf32>
    %5 = tpu.iota {dimensions = array<i32: 1>} : vector<8x128xi32>
    %c64_i32 = arith.constant 64 : i32
    %6 = vector.broadcast %c64_i32 : i32 to vector<8x128xi32>
    %7 = arith.cmpi sge, %5, %6 : vector<8x128xi32>
    %c96_i32 = arith.constant 96 : i32
    %8 = vector.broadcast %c96_i32 : i32 to vector<8x128xi32>
    %9 = arith.cmpi slt, %5, %8 : vector<8x128xi32>
    %10 = arith.andi %7, %9 : vector<8x128xi1>
    %c0_3 = arith.constant 0 : index
    %c0_4 = arith.constant 0 : index
    %11 = vector.load %arg11[%c0_3, %c0_4] : memref<32x128xf32, #tpu.memory_space<vmem>>, vector<32x128xf32>
    %c0_5 = arith.constant 0 : index
    %c0_6 = arith.constant 0 : index
    %12 = vector.load %arg12[%c0_5, %c0_6] : memref<32x128xf32, #tpu.memory_space<vmem>>, vector<32x128xf32>
    %c0_7 = arith.constant 0 : index
    %c0_8 = arith.constant 0 : index
    %13 = vector.load %arg5[%c0_7, %c0_8] : memref<1x128xf32, #tpu.memory_space<vmem>>, vector<1x128xf32>
    %c0_9 = arith.constant 0 : index
    %c0_10 = arith.constant 0 : index
    %c0_11 = arith.constant 0 : index
    %14 = vector.load %arg15[%c0_9, %c0_10, %c0_11] : memref<2x8x32xf32, #tpu.memory_space<vmem>>, vector<1x8x32xf32>
    %15 = vector.shape_cast %14 : vector<1x8x32xf32> to vector<8x32xf32>
    %c0_12 = arith.constant 0 : index
    %c0_13 = arith.constant 0 : index
    %c0_14 = arith.constant 0 : index
    %16 = vector.load %arg16[%c0_12, %c0_13, %c0_14] : memref<2x8x32xf32, #tpu.memory_space<vmem>>, vector<1x8x32xf32>
    %17 = vector.shape_cast %16 : vector<1x8x32xf32> to vector<8x32xf32>
    %cst = arith.constant dense<0.000000e+00> : vector<8x128xf32>
    %18 = tpu.matmul %4, %11, %cst {dimension_numbers = #tpu.dot_dimension_numbers<[1], [0], [0], [1], [0, 0, 1, 1], [], []>} : vector<8x32xf32>, vector<32x128xf32>, vector<8x128xf32> -> vector<8x128xf32>
    %cst_15 = arith.constant dense<0.000000e+00> : vector<8x128xf32>
    %19 = tpu.matmul %15, %12, %cst_15 {dimension_numbers = #tpu.dot_dimension_numbers<[1], [0], [0], [1], [0, 0, 1, 1], [], []>} : vector<8x32xf32>, vector<32x128xf32>, vector<8x128xf32> -> vector<8x128xf32>
    %20 = arith.addf %18, %19 : vector<8x128xf32>
    %21 = vector.broadcast %13 : vector<1x128xf32> to vector<8x128xf32>
    %22 = arith.addf %20, %21 : vector<8x128xf32>
    %23 = math.tanh %22 : vector<8x128xf32>
    %cst_16 = arith.constant 5.000000e-01 : f32
    %24 = vector.broadcast %cst_16 : f32 to vector<8x128xf32>
    %25 = arith.mulf %24, %23 : vector<8x128xf32>
    %cst_17 = arith.constant 5.000000e-01 : f32
    %26 = vector.broadcast %cst_17 : f32 to vector<8x128xf32>
    %27 = arith.addf %25, %26 : vector<8x128xf32>
    %28 = arith.select %10, %23, %27 : vector<8x128xi1>, vector<8x128xf32>
    %29 = vector.extract_strided_slice %28 {offsets = [0, 0], sizes = [8, 32], strides = [1, 1]} : vector<8x128xf32> to vector<8x32xf32>
    %30 = vector.extract_strided_slice %28 {offsets = [0, 32], sizes = [8, 32], strides = [1, 1]} : vector<8x128xf32> to vector<8x32xf32>
    %31 = vector.extract_strided_slice %28 {offsets = [0, 64], sizes = [8, 32], strides = [1, 1]} : vector<8x128xf32> to vector<8x32xf32>
    %32 = vector.extract_strided_slice %28 {offsets = [0, 96], sizes = [8, 32], strides = [1, 1]} : vector<8x128xf32> to vector<8x32xf32>
    %33 = arith.mulf %30, %17 : vector<8x32xf32>
    %34 = arith.mulf %29, %31 : vector<8x32xf32>
    %35 = arith.addf %33, %34 : vector<8x32xf32>
    %36 = math.tanh %35 : vector<8x32xf32>
    %37 = arith.mulf %32, %36 : vector<8x32xf32>
    %c0_18 = arith.constant 0 : index
    %c0_19 = arith.constant 0 : index
    %c0_20 = arith.constant 0 : index
    %38 = vector.load %arg16[%c0_18, %c0_19, %c0_20] : memref<2x8x32xf32, #tpu.memory_space<vmem>>, vector<1x8x32xf32>
    %39 = vector.shape_cast %38 : vector<1x8x32xf32> to vector<8x32xf32>
    %40 = vector.shape_cast %35 : vector<8x32xf32> to vector<1x8x32xf32>
    tpu.vector_store %arg16[%c0_18, %c0_19, %c0_20], %40 {strides = array<i32>} : memref<2x8x32xf32, #tpu.memory_space<vmem>>, vector<1x8x32xf32>,
    %c0_21 = arith.constant 0 : index
    %c0_22 = arith.constant 0 : index
    %c0_23 = arith.constant 0 : index
    %41 = vector.load %arg15[%c0_21, %c0_22, %c0_23] : memref<2x8x32xf32, #tpu.memory_space<vmem>>, vector<1x8x32xf32>
    %42 = vector.shape_cast %41 : vector<1x8x32xf32> to vector<8x32xf32>
    %43 = vector.shape_cast %37 : vector<8x32xf32> to vector<1x8x32xf32>
    tpu.vector_store %arg15[%c0_21, %c0_22, %c0_23], %43 {strides = array<i32>} : memref<2x8x32xf32, #tpu.memory_space<vmem>>, vector<1x8x32xf32>,
    %c0_24 = arith.constant 0 : index
    %c0_25 = arith.constant 0 : index
    %44 = vector.load %arg13[%c0_24, %c0_25] : memref<32x128xf32, #tpu.memory_space<vmem>>, vector<32x128xf32>
    %c0_26 = arith.constant 0 : index
    %c0_27 = arith.constant 0 : index
    %45 = vector.load %arg14[%c0_26, %c0_27] : memref<32x128xf32, #tpu.memory_space<vmem>>, vector<32x128xf32>
    %c0_28 = arith.constant 0 : index
    %c0_29 = arith.constant 0 : index
    %46 = vector.load %arg8[%c0_28, %c0_29] : memref<1x128xf32, #tpu.memory_space<vmem>>, vector<1x128xf32>
    %c1 = arith.constant 1 : index
    %c0_30 = arith.constant 0 : index
    %c0_31 = arith.constant 0 : index
    %47 = vector.load %arg15[%c1, %c0_30, %c0_31] : memref<2x8x32xf32, #tpu.memory_space<vmem>>, vector<1x8x32xf32>
    %48 = vector.shape_cast %47 : vector<1x8x32xf32> to vector<8x32xf32>
    %c1_32 = arith.constant 1 : index
    %c0_33 = arith.constant 0 : index
    %c0_34 = arith.constant 0 : index
    %49 = vector.load %arg16[%c1_32, %c0_33, %c0_34] : memref<2x8x32xf32, #tpu.memory_space<vmem>>, vector<1x8x32xf32>
    %50 = vector.shape_cast %49 : vector<1x8x32xf32> to vector<8x32xf32>
    %cst_35 = arith.constant dense<0.000000e+00> : vector<8x128xf32>
    %51 = tpu.matmul %37, %44, %cst_35 {dimension_numbers = #tpu.dot_dimension_numbers<[1], [0], [0], [1], [0, 0, 1, 1], [], []>} : vector<8x32xf32>, vector<32x128xf32>, vector<8x128xf32> -> vector<8x128xf32>
    %cst_36 = arith.constant dense<0.000000e+00> : vector<8x128xf32>
    %52 = tpu.matmul %48, %45, %cst_36 {dimension_numbers = #tpu.dot_dimension_numbers<[1], [0], [0], [1], [0, 0, 1, 1], [], []>} : vector<8x32xf32>, vector<32x128xf32>, vector<8x128xf32> -> vector<8x128xf32>
    %53 = arith.addf %51, %52 : vector<8x128xf32>
    %54 = vector.broadcast %46 : vector<1x128xf32> to vector<8x128xf32>
    %55 = arith.addf %53, %54 : vector<8x128xf32>
    %56 = math.tanh %55 : vector<8x128xf32>
    %cst_37 = arith.constant 5.000000e-01 : f32
    %57 = vector.broadcast %cst_37 : f32 to vector<8x128xf32>
    %58 = arith.mulf %57, %56 : vector<8x128xf32>
    %cst_38 = arith.constant 5.000000e-01 : f32
    %59 = vector.broadcast %cst_38 : f32 to vector<8x128xf32>
    %60 = arith.addf %58, %59 : vector<8x128xf32>
    %61 = arith.select %10, %56, %60 : vector<8x128xi1>, vector<8x128xf32>
    %62 = vector.extract_strided_slice %61 {offsets = [0, 0], sizes = [8, 32], strides = [1, 1]} : vector<8x128xf32> to vector<8x32xf32>
    %63 = vector.extract_strided_slice %61 {offsets = [0, 32], sizes = [8, 32], strides = [1, 1]} : vector<8x128xf32> to vector<8x32xf32>
    %64 = vector.extract_strided_slice %61 {offsets = [0, 64], sizes = [8, 32], strides = [1, 1]} : vector<8x128xf32> to vector<8x32xf32>
    %65 = vector.extract_strided_slice %61 {offsets = [0, 96], sizes = [8, 32], strides = [1, 1]} : vector<8x128xf32> to vector<8x32xf32>
    %66 = arith.mulf %63, %50 : vector<8x32xf32>
    %67 = arith.mulf %62, %64 : vector<8x32xf32>
    %68 = arith.addf %66, %67 : vector<8x32xf32>
    %69 = math.tanh %68 : vector<8x32xf32>
    %70 = arith.mulf %65, %69 : vector<8x32xf32>
    %c1_39 = arith.constant 1 : index
    %c0_40 = arith.constant 0 : index
    %c0_41 = arith.constant 0 : index
    %71 = vector.load %arg16[%c1_39, %c0_40, %c0_41] : memref<2x8x32xf32, #tpu.memory_space<vmem>>, vector<1x8x32xf32>
    %72 = vector.shape_cast %71 : vector<1x8x32xf32> to vector<8x32xf32>
    %73 = vector.shape_cast %68 : vector<8x32xf32> to vector<1x8x32xf32>
    tpu.vector_store %arg16[%c1_39, %c0_40, %c0_41], %73 {strides = array<i32>} : memref<2x8x32xf32, #tpu.memory_space<vmem>>, vector<1x8x32xf32>,
    %c1_42 = arith.constant 1 : index
    %c0_43 = arith.constant 0 : index
    %c0_44 = arith.constant 0 : index
    %74 = vector.load %arg15[%c1_42, %c0_43, %c0_44] : memref<2x8x32xf32, #tpu.memory_space<vmem>>, vector<1x8x32xf32>
    %75 = vector.shape_cast %74 : vector<1x8x32xf32> to vector<8x32xf32>
    %76 = vector.shape_cast %70 : vector<8x32xf32> to vector<1x8x32xf32>
    tpu.vector_store %arg15[%c1_42, %c0_43, %c0_44], %76 {strides = array<i32>} : memref<2x8x32xf32, #tpu.memory_space<vmem>>, vector<1x8x32xf32>,
    %c7_i32 = arith.constant 7 : i32
    %77 = arith.cmpi eq, %arg1, %c7_i32 : i32
    %78 = arith.extui %77 : i1 to i32
    %c0_i32_45 = arith.constant 0 : i32
    %79 = arith.cmpi ne, %78, %c0_i32_45 : i32
    scf.if %79 {
      %c0_46 = arith.constant 0 : index
      %c0_47 = arith.constant 0 : index
      %c0_48 = arith.constant 0 : index
      %80 = vector.load %arg15[%c0_46, %c0_47, %c0_48] : memref<2x8x32xf32, #tpu.memory_space<vmem>>, vector<2x8x32xf32>
      %c0_49 = arith.constant 0 : index
      %c0_50 = arith.constant 0 : index
      %c0_51 = arith.constant 0 : index
      %81 = vector.load %arg9[%c0_49, %c0_50, %c0_51] : memref<2x8x32xf32, #tpu.memory_space<vmem>>, vector<2x8x32xf32>
      tpu.vector_store %arg9[%c0_49, %c0_50, %c0_51], %80 {strides = array<i32>} : memref<2x8x32xf32, #tpu.memory_space<vmem>>, vector<2x8x32xf32>,
      %c0_52 = arith.constant 0 : index
      %c0_53 = arith.constant 0 : index
      %c0_54 = arith.constant 0 : index
      %82 = vector.load %arg16[%c0_52, %c0_53, %c0_54] : memref<2x8x32xf32, #tpu.memory_space<vmem>>, vector<2x8x32xf32>
      %c0_55 = arith.constant 0 : index
      %c0_56 = arith.constant 0 : index
      %c0_57 = arith.constant 0 : index
      %83 = vector.load %arg10[%c0_55, %c0_56, %c0_57] : memref<2x8x32xf32, #tpu.memory_space<vmem>>, vector<2x8x32xf32>
      tpu.vector_store %arg10[%c0_55, %c0_56, %c0_57], %82 {strides = array<i32>} : memref<2x8x32xf32, #tpu.memory_space<vmem>>, vector<2x8x32xf32>,
    } else {
    }
    return
  }
  func.func @transform_0(%arg0: i32, %arg1: i32) -> (i32, i32, i32) {
    %c0_i32 = arith.constant 0 : i32
    %c0_i32_0 = arith.constant 0 : i32
    return %arg1, %arg0, %c0_i32 : i32, i32, i32
  }
  func.func @transform_3(%arg0: i32, %arg1: i32) -> (i32, i32) {
    %c0_i32 = arith.constant 0 : i32
    %c0_i32_0 = arith.constant 0 : i32
    %c0_i32_1 = arith.constant 0 : i32
    return %c0_i32, %c0_i32_0 : i32, i32
  }
  func.func @transform_6(%arg0: i32, %arg1: i32) -> (i32, i32) {
    %c0_i32 = arith.constant 0 : i32
    %c0_i32_0 = arith.constant 0 : i32
    %c0_i32_1 = arith.constant 0 : i32
    return %c0_i32, %c0_i32_0 : i32, i32
  }
  func.func @transform_7(%arg0: i32, %arg1: i32) -> (i32, i32, i32) {
    %c0_i32 = arith.constant 0 : i32
    %c0_i32_0 = arith.constant 0 : i32
    %c0_i32_1 = arith.constant 0 : i32
    return %c0_i32, %arg0, %c0_i32_0 : i32, i32, i32
  }
  func.func @transform_8(%arg0: i32, %arg1: i32) -> (i32, i32, i32) {
    %c0_i32 = arith.constant 0 : i32
    %c0_i32_0 = arith.constant 0 : i32
    %c0_i32_1 = arith.constant 0 : i32
    return %c0_i32, %arg0, %c0_i32_0 : i32, i32, i32
  }
}

</mosaic_0001>

<llo_original>
// kernel: tpu_custom_call.1
$region0: #{tpu_custom_call.1}
  #allocation0 [shape = 'u32[]', space=smem, size = 0x4, offset = 0x4, fixed_abs, tag = 'smem constant byte address 0x4 - core index']
  #allocation1 [shape = 'u32[144,128]{1,0:T(1,128)}', space=vmem, size = 0x12000, scoped, tag = 'internal scratch']
  #allocation2 [shape = 'f32[32,128]{1,0:T(8,128)}', space=vmem, size = 0x4000, scoped, tag = 'scratch operand']
  #allocation3 [shape = 'f32[32,128]{1,0:T(8,128)}', space=vmem, size = 0x4000, scoped, tag = 'scratch operand']
  #allocation4 [shape = 'f32[32,128]{1,0:T(8,128)}', space=vmem, size = 0x4000, scoped, tag = 'scratch operand']
  #allocation5 [shape = 'f32[32,128]{1,0:T(8,128)}', space=vmem, size = 0x4000, scoped, tag = 'scratch operand']
  #allocation6 [shape = 'f32[2,8,32]{2,1,0:T(8,128)}', space=vmem, size = 0x2000, scoped, tag = 'scratch operand']
  #allocation7 [shape = 'f32[2,8,32]{2,1,0:T(8,128)}', space=vmem, size = 0x2000, scoped, tag = 'scratch operand']
  #allocation15 [shape = 's32[]', space=sflag, size = 0x4, offset = 0, fixed_abs, tag = 'sflag constant byte address 0x0 - dummy sync flag']
  #allocation16 [shape = 's32[]', space=sflag, size = 0x4, offset = 0, fixed_abs, tag = 'sflag constant byte address 0x0 - dummy sync flag']
  #allocation17 [shape = 'u32[]', space=smem, size = 0x4, offset = 0x44, fixed_abs, tag = 'smem constant byte address 0x44 - assertion arg 0']
  #allocation18 [shape = 'u32[]', space=smem, size = 0x4, offset = 0x48, fixed_abs, tag = 'smem constant byte address 0x48 - assertion arg 1']
  #allocation20 [shape = 's32[]', space=sflag, size = 0x4, offset = 0, fixed_abs, tag = 'sflag constant byte address 0x0 - dummy sync flag']
  #allocation21 [shape = 's32[]', space=sflag, size = 0x4, offset = 0, fixed_abs, tag = 'sflag constant byte address 0x0 - dummy sync flag']
  #allocation23 [shape = 's32[]', space=sflag, size = 0x4, offset = 0, fixed_abs, tag = 'sflag constant byte address 0x0 - dummy sync flag']
  #allocation24 [shape = 's32[]', space=sflag, size = 0x4, offset = 0, fixed_abs, tag = 'sflag constant byte address 0x0 - dummy sync flag']
  #allocation26 [shape = 's32[]', space=sflag, size = 0x4, offset = 0, fixed_abs, tag = 'sflag constant byte address 0x0 - dummy sync flag']
  #allocation27 [shape = 's32[]', space=sflag, size = 0x4, offset = 0, fixed_abs, tag = 'sflag constant byte address 0x0 - dummy sync flag']
  %s0 = inlined_call_operand.hbm [shape: f32[8,16,32], index: 0, kind: input, shape index: {}]
  %s1 = inlined_call_operand.hbm [shape: f32[32,128], index: 1, kind: input, shape index: {}]
  %s2 = inlined_call_operand.hbm [shape: f32[32,128], index: 2, kind: input, shape index: {}]
  %s3 = inlined_call_operand.vmem [shape: f32[1,128], index: 3, kind: input, shape index: {}]
  %s4 = inlined_call_operand.hbm [shape: f32[32,128], index: 4, kind: input, shape index: {}]
  %s5 = inlined_call_operand.hbm [shape: f32[32,128], index: 5, kind: input, shape index: {}]
  %s6 = inlined_call_operand.vmem [shape: f32[1,128], index: 6, kind: input, shape index: {}]
  %s7 = inlined_call_operand.hbm [shape: f32[2,16,32], index: 7, kind: output, shape index: {0}]
  %s8 = inlined_call_operand.hbm [shape: f32[2,16,32], index: 8, kind: output, shape index: {1}]
  %9 = xla_tuple %s7, %s8
  %s10 = sld [smem:[#allocation0]]
  $region85: #{tpu_custom_call.1} parent=0
    _
  %s12 = ssub.s32 1, %s10
  %s13 = scalar_select 0, %s12, %s10
  $region1: #{tpu_custom_call.1} parent=0
    #allocation8 [shape = 'u8[8192]{0}', space=vmem, size = 0x2000, scoped, tag = 'input window, operand 0']
    #allocation9 [shape = 's32[2]{0}', space=sflag, size = 0x8, scoped, tag = 'scoped memory for tpu_custom_call.1']
    #allocation10 [shape = 's32[2]{0}', space=sflag, size = 0x8, scoped, tag = 'scoped memory for tpu_custom_call.1']
    #allocation11 [shape = 'u8[16384]{0}', space=vmem, size = 0x4000, scoped, tag = 'output window, operand 0']
    #allocation12 [shape = 'u8[16384]{0}', space=vmem, size = 0x4000, scoped, tag = 'output window, operand 1']
    #allocation13 [shape = 's32[2]{0}', space=sflag, size = 0x8, scoped, tag = 'scoped memory for tpu_custom_call.1']
    %14 = vsyncpa [#allocation9], 0
    %s15 = scalar_lea.sflag [#allocation9], 1
    %16 = vsyncpa %s15, 0
    %17 = vsyncpa [#allocation10], 0
    %s18 = scalar_lea.sflag [#allocation10], 1
    %19 = vsyncpa %s18, 0
    %20 = vsyncpa [#allocation13], 0
    %s21 = scalar_lea.sflag [#allocation13], 1
    %22 = vsyncpa %s21, 0
    loop: start=0, step=1, limit=18
    $region2: #{tpu_custom_call.1} parent=1 // loop_pre_header
      _
    $region3: #{tpu_custom_call.1} parent=1 // loop_header
      %s24 = sphi 0, %s28
      %p25 = scmp.ge.s32.totalorder %s24, 18
      %s31 = sphi 0, %s43
      %s32 = sphi 0, %s39
      %s33 = sphi 0, %s31
      %s34 = sphi 0, %s32
      %s35 = sphi 0, %s33
      %s36 = sphi 0, %s34
      %s48 = sphi 0, %s50
      %s51 = sphi 0, %s48
      %s52 = sphi 0, %s51
      %s68 = sphi 0, %s52
      %s72 = sphi 0, %s72
      %s74 = sphi 0, %s72
      %s75 = sphi 0, %s74
      %s89 = sphi 0, %s75
      %s93 = sphi 0, %s93
      %s95 = sphi 0, %s93
      %s96 = sphi 0, %s95
      %s110 = sphi 0, %s96
      %s116 = sphi 0, %s118
      %s119 = sphi 0, %s116
      %s120 = sphi 0, %s119
      %s136 = sphi 0, %s120
      %s142 = sphi 0, %s144
      %s145 = sphi 0, %s142
      %s146 = sphi 0, %s145
      %s162 = sphi 0, %s146
    $region4: #{tpu_custom_call.1} parent=1 // loop_header_branch
      %27 = sbr.rel (%p25) target = $region8
    $region5: #{tpu_custom_call.1} parent=1 // loop_body
      %s29 = ssub.s32 %s24, 1
      %s30 = ssub.s32 %s24, 2
      %s37 = sadd.s32 1, %s32
      %p38 = scmp.ge.s32.totalorder %s37, 8
      %s39 = scalar_select %p38, 0, %s37
      %s40 = sadd.s32 1, %s31
      %s41 = scalar_select %p38, %s40, %s31
      %p42 = scmp.ge.s32.totalorder %s41, 2
      %s43 = scalar_select %p42, 0, %s41
      %s44 = ssub.s32 %s32, %s39
      %s45 = ssub.s32 %s31, %s43
      %s46 = sor.u32 %s44, %s45
      %p47 = scmp.eq.s32.totalorder %s46, 0
      %s49 = sadd.s32 %s48, 1
      %s50 = scalar_select %p47, %s48, %s49
      %p53 = pneg %p47
      %p54 = scmp.eq.s32.totalorder %s24, 15
      %p55 = por %p53, %p54
      %p56 = scmp.ne.s32.totalorder %s48, %s51
      %p57 = scmp.eq.s32.totalorder %s24, 0
      %p58 = por %p56, %p57
      %p59 = scmp.ne.s32.totalorder %s48, %s51
      %p60 = scmp.eq.s32.totalorder %s29, 15
      %p61 = por %p59, %p60
      %p62 = scmp.ne.s32.totalorder %s51, %s52
      %p63 = scmp.eq.s32.totalorder %s29, 0
      %p64 = por %p62, %p63
      %p65 = scmp.ne.s32.totalorder %s51, %s52
      %p66 = scmp.eq.s32.totalorder %s30, 15
      %p67 = por %p65, %p66
      %p69 = scmp.ne.s32.totalorder %s52, %s68
      %p70 = scmp.eq.s32.totalorder %s30, 0
      %p71 = por %p69, %p70
      %s73 = sadd.s32 %s72, 1
      %p76 = scmp.eq.s32.totalorder %s24, 15
      %p77 = scmp.ne.s32.totalorder %s72, %s74
      %p78 = scmp.eq.s32.totalorder %s24, 0
      %p79 = por %p77, %p78
      %p80 = scmp.ne.s32.totalorder %s72, %s74
      %p81 = scmp.eq.s32.totalorder %s29, 15
      %p82 = por %p80, %p81
      %p83 = scmp.ne.s32.totalorder %s74, %s75
      %p84 = scmp.eq.s32.totalorder %s29, 0
      %p85 = por %p83, %p84
      %p86 = scmp.ne.s32.totalorder %s74, %s75
      %p87 = scmp.eq.s32.totalorder %s30, 15
      %p88 = por %p86, %p87
      %p90 = scmp.ne.s32.totalorder %s75, %s89
      %p91 = scmp.eq.s32.totalorder %s30, 0
      %p92 = por %p90, %p91
      %s94 = sadd.s32 %s93, 1
      %p97 = scmp.eq.s32.totalorder %s24, 15
      %p98 = scmp.ne.s32.totalorder %s93, %s95
      %p99 = scmp.eq.s32.totalorder %s24, 0
      %p100 = por %p98, %p99
      %p101 = scmp.ne.s32.totalorder %s93, %s95
      %p102 = scmp.eq.s32.totalorder %s29, 15
      %p103 = por %p101, %p102
      %p104 = scmp.ne.s32.totalorder %s95, %s96
      %p105 = scmp.eq.s32.totalorder %s29, 0
      %p106 = por %p104, %p105
      %p107 = scmp.ne.s32.totalorder %s95, %s96
      %p108 = scmp.eq.s32.totalorder %s30, 15
      %p109 = por %p107, %p108
      %p111 = scmp.ne.s32.totalorder %s96, %s110
      %p112 = scmp.eq.s32.totalorder %s30, 0
      %p113 = por %p111, %p112
      %s114 = ssub.s32 %s31, %s43
      %p115 = scmp.eq.s32.totalorder %s114, 0
      %s117 = sadd.s32 %s116, 1
      %s118 = scalar_select %p115, %s116, %s117
      %p121 = pneg %p115
      %p122 = scmp.eq.s32.totalorder %s24, 15
      %p123 = por %p121, %p122
      %p124 = scmp.ne.s32.totalorder %s116, %s119
      %p125 = scmp.eq.s32.totalorder %s24, 0
      %p126 = por %p124, %p125
      %p127 = scmp.ne.s32.totalorder %s116, %s119
      %p128 = scmp.eq.s32.totalorder %s29, 15
      %p129 = por %p127, %p128
      %p130 = scmp.ne.s32.totalorder %s119, %s120
      %p131 = scmp.eq.s32.totalorder %s29, 0
      %p132 = por %p130, %p131
      %p133 = scmp.ne.s32.totalorder %s119, %s120
      %p134 = scmp.eq.s32.totalorder %s30, 15
      %p135 = por %p133, %p134
      %p137 = scmp.ne.s32.totalorder %s120, %s136
      %p138 = scmp.eq.s32.totalorder %s30, 0
      %p139 = por %p137, %p138
      %s140 = ssub.s32 %s31, %s43
      %p141 = scmp.eq.s32.totalorder %s140, 0
      %s143 = sadd.s32 %s142, 1
      %s144 = scalar_select %p141, %s142, %s143
      %p147 = pneg %p141
      %p148 = scmp.eq.s32.totalorder %s24, 15
      %p149 = por %p147, %p148
      %p150 = scmp.ne.s32.totalorder %s142, %s145
      %p151 = scmp.eq.s32.totalorder %s24, 0
      %p152 = por %p150, %p151
      %p153 = scmp.ne.s32.totalorder %s142, %s145
      %p154 = scmp.eq.s32.totalorder %s29, 15
      %p155 = por %p153, %p154
      %p156 = scmp.ne.s32.totalorder %s145, %s146
      %p157 = scmp.eq.s32.totalorder %s29, 0
      %p158 = por %p156, %p157
      %p159 = scmp.ne.s32.totalorder %s145, %s146
      %p160 = scmp.eq.s32.totalorder %s30, 15
      %p161 = por %p159, %p160
      %p163 = scmp.ne.s32.totalorder %s146, %s162
      %p164 = scmp.eq.s32.totalorder %s30, 0
      %p165 = por %p163, %p164
      %p166 = scmp.le.s32.totalorder 1, %s24
      %p167 = scmp.lt.s32.totalorder %s24, 17
      %p168 = pnand %p166, %p167
      %p169 = pneg %p168
      // Predicated region
      $region9: #{tpu_custom_call.1} parent=5 // pred_check
        _
      $region10: #{tpu_custom_call.1} parent=5 // pred_check_branch
        %171 = sbr.rel (%p168) target = $region12
      $region11: #{tpu_custom_call.1} parent=5 // pred_region
        %s172 = ssub.s32 %s24, 1
        // Predicated region
        $region13: #{tpu_custom_call.1} parent=11 // pred_check
          %p173 = pneg %p85
        $region14: #{tpu_custom_call.1} parent=11 // pred_check_branch
          %175 = sbr.rel (%p173) target = $region16
        $region15: #{tpu_custom_call.1} parent=11 // pred_region
          _
        $region16: #{tpu_custom_call.1} parent=11 // pred_fallthru
          _
        // Predicated region
        $region17: #{tpu_custom_call.1} parent=11 // pred_check
          %p176 = pneg %p106
        $region18: #{tpu_custom_call.1} parent=11 // pred_check_branch
          %178 = sbr.rel (%p176) target = $region20
        $region19: #{tpu_custom_call.1} parent=11 // pred_region
          _
        $region20: #{tpu_custom_call.1} parent=11 // pred_fallthru
          _
      $region12: #{tpu_custom_call.1} parent=5 // pred_fallthru
        _
      %p179 = scmp.lt.s32.totalorder %s24, 16
      // Predicated region
      $region21: #{tpu_custom_call.1} parent=5 // pred_check
        %p180 = pneg %p179
      $region22: #{tpu_custom_call.1} parent=5 // pred_check_branch
        %182 = sbr.rel (%p180) target = $region24
      $region23: #{tpu_custom_call.1} parent=5 // pred_region
        // Predicated region
        $region25: #{tpu_custom_call.1} parent=23 // pred_check
          %p183 = pneg %p58
        $region26: #{tpu_custom_call.1} parent=23 // pred_check_branch
          %185 = sbr.rel (%p183) target = $region28
        $region27: #{tpu_custom_call.1} parent=23 // pred_region
          %s186 = sand.u32 %s48, 1
          %s187 = scalar_lea.sflag [#allocation9], %s186
          %s188 = sand.u32 %s48, 1
          %s189 = smul.addr %s188, 8
          %s190 = scalar_lea.vmem [#allocation8], %s189
          %s192 = ssub.s32 128, 128
          %193 = vsyncadd %s187, %s192
          %s194 = smul.addr %s32, 2
          %s195 = sadd.s32 %s31, %s194
          %s196 = smul.addr %s195, 128
          %s197 = scalar_lea.hbm %s0, %s196
          %s199 = sshll.u32 %s190, 4
          %s200 = int_to_ptr.vmem [resolvable:$true] %s199
          %202 = dma.hbm_to_vmem [thread:$0]  %s197, 128, %s200, %s187
        $region28: #{tpu_custom_call.1} parent=23 // pred_fallthru
          _
      $region24: #{tpu_custom_call.1} parent=5 // pred_fallthru
        _
      %p203 = scmp.le.s32.totalorder 1, %s24
      %p204 = scmp.lt.s32.totalorder %s24, 17
      %p205 = pnand %p203, %p204
      %p206 = pneg %p205
      // Predicated region
      $region29: #{tpu_custom_call.1} parent=5 // pred_check
        _
      $region30: #{tpu_custom_call.1} parent=5 // pred_check_branch
        %208 = sbr.rel (%p205) target = $region32
      $region31: #{tpu_custom_call.1} parent=5 // pred_region
        %s209 = ssub.s32 %s24, 1
        %s210 = sand.u32 %s51, 1
        %s211 = scalar_lea.sflag [#allocation9], %s210
        %s212 = sand.u32 %s51, 1
        %s213 = smul.addr %s212, 8
        %s214 = scalar_lea.vmem [#allocation8], %s213
        // Predicated region
        $region33: #{tpu_custom_call.1} parent=31 // pred_check
          %p215 = pneg %p64
        $region34: #{tpu_custom_call.1} parent=31 // pred_check_branch
          %217 = sbr.rel (%p215) target = $region36
        $region35: #{tpu_custom_call.1} parent=31 // pred_region
          %218 = dma.done %s211, 128
        $region36: #{tpu_custom_call.1} parent=31 // pred_fallthru
          _
        %s219 = sand.u32 %s51, 1
        %s220 = scalar_lea.sflag [#allocation9], %s219
        %s221 = sand.u32 %s51, 1
        %s222 = smul.addr %s221, 8
        %s223 = scalar_lea.vmem [#allocation8], %s222
        %p224 = pneg %p64
        %p225 = pneg %p61
        %p226 = pneg %p85
        %p227 = pneg %p82
        %p228 = pneg %p106
        %p229 = pneg %p103
        %p230 = pneg %p132
        %p231 = pneg %p129
        %s232 = sand.u32 %s119, 1
        %s233 = scalar_lea.sflag [#allocation10], %s232
        %s234 = sand.u32 %s119, 1
        %s235 = smul.addr %s234, 16
        %s236 = scalar_lea.vmem [#allocation11], %s235
        %p237 = pneg %p158
        %p238 = pneg %p155
        %s239 = sand.u32 %s145, 1
        %s240 = scalar_lea.sflag [#allocation13], %s239
        %s241 = sand.u32 %s145, 1
        %s242 = smul.addr %s241, 16
        %s243 = scalar_lea.vmem [#allocation12], %s242
        %p244 = scmp.eq.s32.totalorder %s34, 0
        // Predicated region
        $region37: #{tpu_custom_call.1} parent=31 // pred_check
          %p245 = pneg %p244
        $region38: #{tpu_custom_call.1} parent=31 // pred_check_branch
          %247 = sbr.rel (%p245) target = $region40
        $region39: #{tpu_custom_call.1} parent=31 // pred_region
          $region41: #{tpu_custom_call.1} parent=39
            #allocation14 [shape = 's32[1]{0}', space=sflag, size = 0x4, scoped, tag = 'scoped memory for tpu_custom_call.1']
            // Predicated region
            $region42: #{tpu_custom_call.1} parent=41 // pred_check
              _
            $region43: #{tpu_custom_call.1} parent=41 // pred_check_branch
              %249 = sbr.rel target = $region45
            $region44: #{tpu_custom_call.1} parent=41 // pred_region
              %250 = sst [smem:[#allocation17]] [#allocation16]
              %251 = sst [smem:[#allocation18]] [#allocation15]
            $region45: #{tpu_custom_call.1} parent=41 // pred_fallthru
              _
            %253 = shalt.err (0)
            %s255 = sshll.u32 [#allocation2], 4
            %s256 = int_to_ptr.vmem [resolvable:$true] %s255
            %258 = dma.hbm_to_vmem [thread:$0]  %s1, 512, %s256, [#allocation14]
            %s259 = smul.u32 32, 1
            %s260 = sshll.u32 %s259, 4
            %261 = dma.done [#allocation14], %s260
          $region46: #{tpu_custom_call.1} parent=39
            #allocation19 [shape = 's32[1]{0}', space=sflag, size = 0x4, scoped, tag = 'scoped memory for tpu_custom_call.1']
            // Predicated region
            $region47: #{tpu_custom_call.1} parent=46 // pred_check
              _
            $region48: #{tpu_custom_call.1} parent=46 // pred_check_branch
              %263 = sbr.rel target = $region50
            $region49: #{tpu_custom_call.1} parent=46 // pred_region
              %264 = sst [smem:[#allocation17]] [#allocation21]
              %265 = sst [smem:[#allocation18]] [#allocation20]
            $region50: #{tpu_custom_call.1} parent=46 // pred_fallthru
              _
            %267 = shalt.err (0)
            %s269 = sshll.u32 [#allocation3], 4
            %s270 = int_to_ptr.vmem [resolvable:$true] %s269
            %272 = dma.hbm_to_vmem [thread:$0]  %s2, 512, %s270, [#allocation19]
            %s273 = smul.u32 32, 1
            %s274 = sshll.u32 %s273, 4
            %275 = dma.done [#allocation19], %s274
          $region51: #{tpu_custom_call.1} parent=39
            #allocation22 [shape = 's32[1]{0}', space=sflag, size = 0x4, scoped, tag = 'scoped memory for tpu_custom_call.1']
            // Predicated region
            $region52: #{tpu_custom_call.1} parent=51 // pred_check
              _
            $region53: #{tpu_custom_call.1} parent=51 // pred_check_branch
              %277 = sbr.rel target = $region55
            $region54: #{tpu_custom_call.1} parent=51 // pred_region
              %278 = sst [smem:[#allocation17]] [#allocation24]
              %279 = sst [smem:[#allocation18]] [#allocation23]
            $region55: #{tpu_custom_call.1} parent=51 // pred_fallthru
              _
            %281 = shalt.err (0)
            %s283 = sshll.u32 [#allocation4], 4
            %s284 = int_to_ptr.vmem [resolvable:$true] %s283
            %286 = dma.hbm_to_vmem [thread:$0]  %s4, 512, %s284, [#allocation22]
            %s287 = smul.u32 32, 1
            %s288 = sshll.u32 %s287, 4
            %289 = dma.done [#allocation22], %s288
          $region56: #{tpu_custom_call.1} parent=39
            #allocation25 [shape = 's32[1]{0}', space=sflag, size = 0x4, scoped, tag = 'scoped memory for tpu_custom_call.1']
            // Predicated region
            $region57: #{tpu_custom_call.1} parent=56 // pred_check
              _
            $region58: #{tpu_custom_call.1} parent=56 // pred_check_branch
              %291 = sbr.rel target = $region60
            $region59: #{tpu_custom_call.1} parent=56 // pred_region
              %292 = sst [smem:[#allocation17]] [#allocation27]
              %293 = sst [smem:[#allocation18]] [#allocation26]
            $region60: #{tpu_custom_call.1} parent=56 // pred_fallthru
              _
            %295 = shalt.err (0)
            %s297 = sshll.u32 [#allocation5], 4
            %s298 = int_to_ptr.vmem [resolvable:$true] %s297
            %300 = dma.hbm_to_vmem [thread:$0]  %s5, 512, %s298, [#allocation25]
            %s301 = smul.u32 32, 1
            %s302 = sshll.u32 %s301, 4
            %303 = dma.done [#allocation25], %s302
          %vm304 = vcmask 261120
          %305 = vst.msk [vmem:[#allocation6] sm:$0xff] %vm304, 0.0
          %306 = vst.msk [vmem:[#allocation6 + $0x8] sm:$0xff] %vm304, 0.0
          %307 = vst.msk [vmem:[#allocation7] sm:$0xff] %vm304, 0.0
          %308 = vst.msk [vmem:[#allocation7 + $0x8] sm:$0xff] %vm304, 0.0
        $region40: #{tpu_custom_call.1} parent=31 // pred_fallthru
          _
        %v309 = vld [vmem:[%s214] sm:$0xff]
        %v310 = vlaneseq
        %v311 = vand.u32 %v310, 127
        %vm312 = vcmp.ge.s32.totalorder %v311, 64
        %vm313 = vcmp.lt.s32.totalorder %v311, 96
        %vm314 = vmand %vm312, %vm313
        %v315 = vld [vmem:[#allocation2] sm:$0xff]
        %v316 = vld [vmem:[#allocation2 + $0x8] sm:$0xff]
        %v317 = vld [vmem:[#allocation2 + $0x10] sm:$0xff]
        %v318 = vld [vmem:[#allocation2 + $0x18] sm:$0xff]
        %v319 = vld [vmem:[#allocation3] sm:$0xff]
        %v320 = vld [vmem:[#allocation3 + $0x8] sm:$0xff]
        %v321 = vld [vmem:[#allocation3 + $0x10] sm:$0xff]
        %v322 = vld [vmem:[#allocation3 + $0x18] sm:$0xff]
        %v323 = vld [vmem:[%s3] sm:$0x1]
        %v324 = vld [vmem:[#allocation6] sm:$0xff]
        %v325 = vld [vmem:[#allocation7] sm:$0xff]
        %vm326 = vcmask 261120
        %v328 = vsel %vm326, %v324, 0
        %330 = vmatprep.subr.mxu0 0.0
        %331 = vmatpush1.msra.mxu0 %v319
        %332 = vmatprep.subr.mxu0 0.0
        %333 = vmatpush1.msra.mxu0 %v320
        %334 = vmatprep.subr.mxu0 0.0
        %335 = vmatpush1.msra.mxu0 %v321
        %336 = vmatprep.subr.mxu0 0.0
        %337 = vmatpush1.msra.mxu0 %v322
        %338 = vmatprep.subr.mxu0 0.0
        %339 = vmatpush1.msra.mxu0 0.0
        %340 = vmatprep.subr.mxu0 0.0
        %341 = vmatpush1.msra.mxu0 0.0
        %342 = vmatprep.subr.mxu0 0.0
        %343 = vmatpush1.msra.mxu0 0.0
        %344 = vmatprep.subr.mxu0 0.0
        %345 = vmatpush1.msra.mxu0 0.0
        %346 = vmatprep.subr.mxu0 0.0
        %347 = vmatpush1.msra.mxu0 0.0
        %348 = vmatprep.subr.mxu0 0.0
        %349 = vmatpush1.msra.mxu0 0.0
        %350 = vmatprep.subr.mxu0 0.0
        %351 = vmatpush1.msra.mxu0 0.0
        %352 = vmatprep.subr.mxu0 0.0
        %353 = vmatpush1.msra.mxu0 0.0
        %354 = vmatprep.subr.mxu0 0.0
        %355 = vmatpush1.msra.mxu0 0.0
        %356 = vmatprep.subr.mxu0 0.0
        %357 = vmatpush1.msra.mxu0 0.0
        %358 = vmatprep.subr.mxu0 0.0
        %359 = vmatpush1.msra.mxu0 0.0
        %360 = vmatprep.subr.mxu0 0.0
        %361 = vmatpush1.msra.mxu0 0.0
        %362 = vmatprep.subr.mxu0 0.0
        %363 = vmatpush1.msra.mxu0 0.0
        %364 = vmatprep.subr.mxu0 0.0
        %365 = vmatpush1.msra.mxu0 0.0
        %366 = vmatprep.subr.mxu0 0.0
        %367 = vmatpush1.msra.mxu0 0.0
        %368 = vmatprep.subr.mxu0 0.0
        %369 = vmatpush1.msra.mxu0 0.0
        %370 = vmatprep.subr.mxu0 0.0
        %371 = vmatpush1.msra.mxu0 0.0
        %372 = vmatprep.subr.mxu0 0.0
        %373 = vmatpush1.msra.mxu0 0.0
        %374 = vmatprep.subr.mxu0 0.0
        %375 = vmatpush1.msra.mxu0 0.0
        %376 = vmatprep.subr.mxu0 0.0
        %377 = vmatpush1.msra.mxu0 0.0
        %378 = vmatprep.subr.mxu0 0.0
        %379 = vmatpush1.msra.mxu0 0.0
        %380 = vmatprep.subr.mxu0 0.0
        %381 = vmatpush1.msra.mxu0 0.0
        %382 = vmatprep.subr.mxu0 0.0
        %383 = vmatpush1.msra.mxu0 0.0
        %384 = vmatprep.subr.mxu0 0.0
        %385 = vmatpush1.msra.mxu0 0.0
        %386 = vmatprep.subr.mxu0 0.0
        %387 = vmatpush1.msra.mxu0 0.0
        %388 = vmatprep.subr.mxu0 0.0
        %389 = vmatpush1.msra.mxu0 0.0
        %390 = vmatprep.subr.mxu0 0.0
        %391 = vmatpush1.msra.mxu0 0.0
        %392 = vmatprep.subr.mxu0 0.0
        %393 = vmatpush1.msra.mxu0 0.0
        %394 = vmatprep.mubr.f32.mxu0 0.0
        %395 = vmatmul.mubr.f32.gmra.mrb[0].mxu0 %v328
        %v396 = vpop.f32.mrb[0].mxu0
        %v397 = vadd.f32 0.0, %v396
        %v398 = vpop.f32.mrb[0].mxu0
        %399 = vdwg.mxu0
        %v401 = vsel %vm326, %v309, 0
        %403 = vmatprep.subr.mxu0 0.0
        %404 = vmatpush1.msra.mxu0 %v315
        %405 = vmatprep.subr.mxu0 0.0
        %406 = vmatpush1.msra.mxu0 %v316
        %407 = vmatprep.subr.mxu0 0.0
        %408 = vmatpush1.msra.mxu0 %v317
        %409 = vmatprep.subr.mxu0 0.0
        %410 = vmatpush1.msra.mxu0 %v318
        %411 = vmatprep.subr.mxu0 0.0
        %412 = vmatpush1.msra.mxu0 0.0
        %413 = vmatprep.subr.mxu0 0.0
        %414 = vmatpush1.msra.mxu0 0.0
        %415 = vmatprep.subr.mxu0 0.0
        %416 = vmatpush1.msra.mxu0 0.0
        %417 = vmatprep.subr.mxu0 0.0
        %418 = vmatpush1.msra.mxu0 0.0
        %419 = vmatprep.subr.mxu0 0.0
        %420 = vmatpush1.msra.mxu0 0.0
        %421 = vmatprep.subr.mxu0 0.0
        %422 = vmatpush1.msra.mxu0 0.0
        %423 = vmatprep.subr.mxu0 0.0
        %424 = vmatpush1.msra.mxu0 0.0
        %425 = vmatprep.subr.mxu0 0.0
        %426 = vmatpush1.msra.mxu0 0.0
        %427 = vmatprep.subr.mxu0 0.0
        %428 = vmatpush1.msra.mxu0 0.0
        %429 = vmatprep.subr.mxu0 0.0
        %430 = vmatpush1.msra.mxu0 0.0
        %431 = vmatprep.subr.mxu0 0.0
        %432 = vmatpush1.msra.mxu0 0.0
        %433 = vmatprep.subr.mxu0 0.0
        %434 = vmatpush1.msra.mxu0 0.0
        %435 = vmatprep.subr.mxu0 0.0
        %436 = vmatpush1.msra.mxu0 0.0
        %437 = vmatprep.subr.mxu0 0.0
        %438 = vmatpush1.msra.mxu0 0.0
        %439 = vmatprep.subr.mxu0 0.0
        %440 = vmatpush1.msra.mxu0 0.0
        %441 = vmatprep.subr.mxu0 0.0
        %442 = vmatpush1.msra.mxu0 0.0
        %443 = vmatprep.subr.mxu0 0.0
        %444 = vmatpush1.msra.mxu0 0.0
        %445 = vmatprep.subr.mxu0 0.0
        %446 = vmatpush1.msra.mxu0 0.0
        %447 = vmatprep.subr.mxu0 0.0
        %448 = vmatpush1.msra.mxu0 0.0
        %449 = vmatprep.subr.mxu0 0.0
        %450 = vmatpush1.msra.mxu0 0.0
        %451 = vmatprep.subr.mxu0 0.0
        %452 = vmatpush1.msra.mxu0 0.0
        %453 = vmatprep.subr.mxu0 0.0
        %454 = vmatpush1.msra.mxu0 0.0
        %455 = vmatprep.subr.mxu0 0.0
        %456 = vmatpush1.msra.mxu0 0.0
        %457 = vmatprep.subr.mxu0 0.0
        %458 = vmatpush1.msra.mxu0 0.0
        %459 = vmatprep.subr.mxu0 0.0
        %460 = vmatpush1.msra.mxu0 0.0
        %461 = vmatprep.subr.mxu0 0.0
        %462 = vmatpush1.msra.mxu0 0.0
        %463 = vmatprep.subr.mxu0 0.0
        %464 = vmatpush1.msra.mxu0 0.0
        %465 = vmatprep.subr.mxu0 0.0
        %466 = vmatpush1.msra.mxu0 0.0
        %467 = vmatprep.mubr.f32.mxu0 0.0
        %468 = vmatmul.mubr.f32.gmra.mrb[0].mxu0 %v401
        %v469 = vpop.f32.mrb[0].mxu0
        %v470 = vadd.f32 %v397, %v469
        %v471 = vpop.f32.mrb[0].mxu0
        %472 = vdwg.mxu0
        %v474 = vlaneseq
        %v475 = vshrl.u32 %v474, 7
        %v476 = vsub.s32 0, %v475
        %v477 = vrot.slane %v323, %v476
        %v479 = vadd.f32 %v470, %v477
        %v480 = vtanh.pop %v479
        %v481 = vmul.f32 %v480, 0.5
        %v482 = vadd.f32 %v481, 0.5
        %v483 = vsel %vm314, %v480, %v482
        %485 = vrot.lane.b32.xlu0 %v325, 32
        %v486 = vpop.permute.xlu0 %485
        %v488 = vmul.f32 %v483, %v486
        %490 = vrot.lane.b32.xlu0 %v483, 64
        %v491 = vpop.permute.xlu0 %490
        %v493 = vmul.f32 %v483, %v491
        %495 = vrot.lane.b32.xlu0 %v493, 32
        %v496 = vpop.permute.xlu0 %495
        %v498 = vadd.f32 %v488, %v496
        %v499 = vtanh.pop %v498
        %501 = vrot.lane.b32.xlu0 %v499, 64
        %v502 = vpop.permute.xlu0 %501
        %v504 = vmul.f32 %v483, %v502
        %506 = vrot.lane.b32.xlu0 %v498, 96
        %v507 = vpop.permute.xlu0 %506
        %509 = vst.msk [vmem:[#allocation7] sm:$0xff] %vm326, %v507
        %511 = vrot.lane.b32.xlu0 %v504, 32
        %v512 = vpop.permute.xlu0 %511
        %514 = vst.msk [vmem:[#allocation6] sm:$0xff] %vm326, %v512
        %v515 = vld [vmem:[#allocation4] sm:$0xff]
        %v516 = vld [vmem:[#allocation4 + $0x8] sm:$0xff]
        %v517 = vld [vmem:[#allocation4 + $0x10] sm:$0xff]
        %v518 = vld [vmem:[#allocation4 + $0x18] sm:$0xff]
        %v519 = vld [vmem:[#allocation5] sm:$0xff]
        %v520 = vld [vmem:[#allocation5 + $0x8] sm:$0xff]
        %v521 = vld [vmem:[#allocation5 + $0x10] sm:$0xff]
        %v522 = vld [vmem:[#allocation5 + $0x18] sm:$0xff]
        %v523 = vld [vmem:[%s6] sm:$0x1]
        %s524 = scalar_lea.vmem [#allocation6], 8
        %v525 = vld [vmem:[%s524] sm:$0xff]
        %s526 = scalar_lea.vmem [#allocation7], 8
        %v527 = vld [vmem:[%s526] sm:$0xff]
        %v529 = vsel %vm326, %v525, 0
        %531 = vmatprep.subr.mxu0 0.0
        %532 = vmatpush1.msra.mxu0 %v519
        %533 = vmatprep.subr.mxu0 0.0
        %534 = vmatpush1.msra.mxu0 %v520
        %535 = vmatprep.subr.mxu0 0.0
        %536 = vmatpush1.msra.mxu0 %v521
        %537 = vmatprep.subr.mxu0 0.0
        %538 = vmatpush1.msra.mxu0 %v522
        %539 = vmatprep.subr.mxu0 0.0
        %540 = vmatpush1.msra.mxu0 0.0
        %541 = vmatprep.subr.mxu0 0.0
        %542 = vmatpush1.msra.mxu0 0.0
        %543 = vmatprep.subr.mxu0 0.0
        %544 = vmatpush1.msra.mxu0 0.0
        %545 = vmatprep.subr.mxu0 0.0
        %546 = vmatpush1.msra.mxu0 0.0
        %547 = vmatprep.subr.mxu0 0.0
        %548 = vmatpush1.msra.mxu0 0.0
        %549 = vmatprep.subr.mxu0 0.0
        %550 = vmatpush1.msra.mxu0 0.0
        %551 = vmatprep.subr.mxu0 0.0
        %552 = vmatpush1.msra.mxu0 0.0
        %553 = vmatprep.subr.mxu0 0.0
        %554 = vmatpush1.msra.mxu0 0.0
        %555 = vmatprep.subr.mxu0 0.0
        %556 = vmatpush1.msra.mxu0 0.0
        %557 = vmatprep.subr.mxu0 0.0
        %558 = vmatpush1.msra.mxu0 0.0
        %559 = vmatprep.subr.mxu0 0.0
        %560 = vmatpush1.msra.mxu0 0.0
        %561 = vmatprep.subr.mxu0 0.0
        %562 = vmatpush1.msra.mxu0 0.0
        %563 = vmatprep.subr.mxu0 0.0
        %564 = vmatpush1.msra.mxu0 0.0
        %565 = vmatprep.subr.mxu0 0.0
        %566 = vmatpush1.msra.mxu0 0.0
        %567 = vmatprep.subr.mxu0 0.0
        %568 = vmatpush1.msra.mxu0 0.0
        %569 = vmatprep.subr.mxu0 0.0
        %570 = vmatpush1.msra.mxu0 0.0
        %571 = vmatprep.subr.mxu0 0.0
        %572 = vmatpush1.msra.mxu0 0.0
        %573 = vmatprep.subr.mxu0 0.0
        %574 = vmatpush1.msra.mxu0 0.0
        %575 = vmatprep.subr.mxu0 0.0
        %576 = vmatpush1.msra.mxu0 0.0
        %577 = vmatprep.subr.mxu0 0.0
        %578 = vmatpush1.msra.mxu0 0.0
        %579 = vmatprep.subr.mxu0 0.0
        %580 = vmatpush1.msra.mxu0 0.0
        %581 = vmatprep.subr.mxu0 0.0
        %582 = vmatpush1.msra.mxu0 0.0
        %583 = vmatprep.subr.mxu0 0.0
        %584 = vmatpush1.msra.mxu0 0.0
        %585 = vmatprep.subr.mxu0 0.0
        %586 = vmatpush1.msra.mxu0 0.0
        %587 = vmatprep.subr.mxu0 0.0
        %588 = vmatpush1.msra.mxu0 0.0
        %589 = vmatprep.subr.mxu0 0.0
        %590 = vmatpush1.msra.mxu0 0.0
        %591 = vmatprep.subr.mxu0 0.0
        %592 = vmatpush1.msra.mxu0 0.0
        %593 = vmatprep.subr.mxu0 0.0
        %594 = vmatpush1.msra.mxu0 0.0
        %595 = vmatprep.mubr.f32.mxu0 0.0
        %596 = vmatmul.mubr.f32.gmra.mrb[0].mxu0 %v529
        %v597 = vpop.f32.mrb[0].mxu0
        %v598 = vadd.f32 0.0, %v597
        %v599 = vpop.f32.mrb[0].mxu0
        %600 = vdwg.mxu0
        %v601 = vsel %vm326, %v512, 0
        %603 = vmatprep.subr.mxu0 0.0
        %604 = vmatpush1.msra.mxu0 %v515
        %605 = vmatprep.subr.mxu0 0.0
        %606 = vmatpush1.msra.mxu0 %v516
        %607 = vmatprep.subr.mxu0 0.0
        %608 = vmatpush1.msra.mxu0 %v517
        %609 = vmatprep.subr.mxu0 0.0
        %610 = vmatpush1.msra.mxu0 %v518
        %611 = vmatprep.subr.mxu0 0.0
        %612 = vmatpush1.msra.mxu0 0.0
        %613 = vmatprep.subr.mxu0 0.0
        %614 = vmatpush1.msra.mxu0 0.0
        %615 = vmatprep.subr.mxu0 0.0
        %616 = vmatpush1.msra.mxu0 0.0
        %617 = vmatprep.subr.mxu0 0.0
        %618 = vmatpush1.msra.mxu0 0.0
        %619 = vmatprep.subr.mxu0 0.0
        %620 = vmatpush1.msra.mxu0 0.0
        %621 = vmatprep.subr.mxu0 0.0
        %622 = vmatpush1.msra.mxu0 0.0
        %623 = vmatprep.subr.mxu0 0.0
        %624 = vmatpush1.msra.mxu0 0.0
        %625 = vmatprep.subr.mxu0 0.0
        %626 = vmatpush1.msra.mxu0 0.0
        %627 = vmatprep.subr.mxu0 0.0
        %628 = vmatpush1.msra.mxu0 0.0
        %629 = vmatprep.subr.mxu0 0.0
        %630 = vmatpush1.msra.mxu0 0.0
        %631 = vmatprep.subr.mxu0 0.0
        %632 = vmatpush1.msra.mxu0 0.0
        %633 = vmatprep.subr.mxu0 0.0
        %634 = vmatpush1.msra.mxu0 0.0
        %635 = vmatprep.subr.mxu0 0.0
        %636 = vmatpush1.msra.mxu0 0.0
        %637 = vmatprep.subr.mxu0 0.0
        %638 = vmatpush1.msra.mxu0 0.0
        %639 = vmatprep.subr.mxu0 0.0
        %640 = vmatpush1.msra.mxu0 0.0
        %641 = vmatprep.subr.mxu0 0.0
        %642 = vmatpush1.msra.mxu0 0.0
        %643 = vmatprep.subr.mxu0 0.0
        %644 = vmatpush1.msra.mxu0 0.0
        %645 = vmatprep.subr.mxu0 0.0
        %646 = vmatpush1.msra.mxu0 0.0
        %647 = vmatprep.subr.mxu0 0.0
        %648 = vmatpush1.msra.mxu0 0.0
        %649 = vmatprep.subr.mxu0 0.0
        %650 = vmatpush1.msra.mxu0 0.0
        %651 = vmatprep.subr.mxu0 0.0
        %652 = vmatpush1.msra.mxu0 0.0
        %653 = vmatprep.subr.mxu0 0.0
        %654 = vmatpush1.msra.mxu0 0.0
        %655 = vmatprep.subr.mxu0 0.0
        %656 = vmatpush1.msra.mxu0 0.0
        %657 = vmatprep.subr.mxu0 0.0
        %658 = vmatpush1.msra.mxu0 0.0
        %659 = vmatprep.subr.mxu0 0.0
        %660 = vmatpush1.msra.mxu0 0.0
        %661 = vmatprep.subr.mxu0 0.0
        %662 = vmatpush1.msra.mxu0 0.0
        %663 = vmatprep.subr.mxu0 0.0
        %664 = vmatpush1.msra.mxu0 0.0
        %665 = vmatprep.subr.mxu0 0.0
        %666 = vmatpush1.msra.mxu0 0.0
        %667 = vmatprep.mubr.f32.mxu0 0.0
        %668 = vmatmul.mubr.f32.gmra.mrb[0].mxu0 %v601
        %v669 = vpop.f32.mrb[0].mxu0
        %v670 = vadd.f32 %v598, %v669
        %v671 = vpop.f32.mrb[0].mxu0
        %672 = vdwg.mxu0
        %v674 = vlaneseq
        %v675 = vshrl.u32 %v674, 7
        %v676 = vsub.s32 0, %v675
        %v677 = vrot.slane %v523, %v676
        %v679 = vadd.f32 %v670, %v677
        %v680 = vtanh.pop %v679
        %v681 = vmul.f32 %v680, 0.5
        %v682 = vadd.f32 %v681, 0.5
        %v683 = vsel %vm314, %v680, %v682
        %685 = vrot.lane.b32.xlu0 %v527, 32
        %v686 = vpop.permute.xlu0 %685
        %v688 = vmul.f32 %v683, %v686
        %690 = vrot.lane.b32.xlu0 %v683, 64
        %v691 = vpop.permute.xlu0 %690
        %v693 = vmul.f32 %v683, %v691
        %695 = vrot.lane.b32.xlu0 %v693, 32
        %v696 = vpop.permute.xlu0 %695
        %v698 = vadd.f32 %v688, %v696
        %v699 = vtanh.pop %v698
        %701 = vrot.lane.b32.xlu0 %v699, 64
        %v702 = vpop.permute.xlu0 %701
        %v704 = vmul.f32 %v683, %v702
        %706 = vrot.lane.b32.xlu0 %v698, 96
        %v707 = vpop.permute.xlu0 %706
        %709 = vst.msk [vmem:[%s526] sm:$0xff] %vm326, %v707
        %711 = vrot.lane.b32.xlu0 %v704, 32
        %v712 = vpop.permute.xlu0 %711
        %714 = vst.msk [vmem:[%s524] sm:$0xff] %vm326, %v712
        %p715 = scmp.eq.s32.totalorder %s34, 7
        // Predicated region
        $region61: #{tpu_custom_call.1} parent=31 // pred_check
          %p716 = pneg %p715
        $region62: #{tpu_custom_call.1} parent=31 // pred_check_branch
          %718 = sbr.rel (%p716) target = $region64
        $region63: #{tpu_custom_call.1} parent=31 // pred_region
          %v719 = vld [vmem:[#allocation6] sm:$0xff]
          %v720 = vld [vmem:[#allocation6 + $0x8] sm:$0xff]
          %721 = vst.msk [vmem:[%s236] sm:$0xff] %vm326, %v719
          %722 = vst.msk [vmem:[%s236 + $0x8] sm:$0xff] %vm326, %v720
          %v723 = vld [vmem:[#allocation7] sm:$0xff]
          %v724 = vld [vmem:[#allocation7 + $0x8] sm:$0xff]
          %725 = vst.msk [vmem:[%s243] sm:$0xff] %vm326, %v723
          %726 = vst.msk [vmem:[%s243 + $0x8] sm:$0xff] %vm326, %v724
        $region64: #{tpu_custom_call.1} parent=31 // pred_fallthru
          _
        %s727 = sand.u32 %s119, 1
        %s728 = scalar_lea.sflag [#allocation10], %s727
        %s729 = sand.u32 %s119, 1
        %s730 = smul.addr %s729, 16
        %s731 = scalar_lea.vmem [#allocation11], %s730
        %s732 = sand.u32 %s145, 1
        %s733 = scalar_lea.sflag [#allocation13], %s732
        %s734 = sand.u32 %s145, 1
        %s735 = smul.addr %s734, 16
        %s736 = scalar_lea.vmem [#allocation12], %s735
        // Predicated region
        $region65: #{tpu_custom_call.1} parent=31 // pred_check
          %p737 = pneg %p129
        $region66: #{tpu_custom_call.1} parent=31 // pred_check_branch
          %739 = sbr.rel (%p737) target = $region68
        $region67: #{tpu_custom_call.1} parent=31 // pred_region
          %s741 = ssub.s32 256, 256
          %742 = vsyncadd %s728, %s741
          %s743 = smul.addr %s33, 128
          %s744 = scalar_lea.hbm %s7, %s743
          %s745 = sshll.u32 %s731, 4
          %s746 = int_to_ptr.vmem [resolvable:$true] %s745
          %751 = dma.vmem_to_hbm [thread:$0]  %s746, 256, %s744, %s728, 128, 256, 8
        $region68: #{tpu_custom_call.1} parent=31 // pred_fallthru
          _
        // Predicated region
        $region69: #{tpu_custom_call.1} parent=31 // pred_check
          %p752 = pneg %p155
        $region70: #{tpu_custom_call.1} parent=31 // pred_check_branch
          %754 = sbr.rel (%p752) target = $region72
        $region71: #{tpu_custom_call.1} parent=31 // pred_region
          %s756 = ssub.s32 256, 256
          %757 = vsyncadd %s733, %s756
          %s758 = smul.addr %s33, 128
          %s759 = scalar_lea.hbm %s8, %s758
          %s760 = sshll.u32 %s736, 4
          %s761 = int_to_ptr.vmem [resolvable:$true] %s760
          %766 = dma.vmem_to_hbm [thread:$0]  %s761, 256, %s759, %s733, 128, 256, 8
        $region72: #{tpu_custom_call.1} parent=31 // pred_fallthru
          _
      $region32: #{tpu_custom_call.1} parent=5 // pred_fallthru
        _
      %p767 = scmp.le.s32.totalorder 2, %s24
      // Predicated region
      $region73: #{tpu_custom_call.1} parent=5 // pred_check
        %p768 = pneg %p767
      $region74: #{tpu_custom_call.1} parent=5 // pred_check_branch
        %770 = sbr.rel (%p768) target = $region76
      $region75: #{tpu_custom_call.1} parent=5 // pred_region
        %s771 = ssub.s32 %s24, 2
        // Predicated region
        $region77: #{tpu_custom_call.1} parent=75 // pred_check
          %p772 = pneg %p135
        $region78: #{tpu_custom_call.1} parent=75 // pred_check_branch
          %774 = sbr.rel (%p772) target = $region80
        $region79: #{tpu_custom_call.1} parent=75 // pred_region
          %s775 = sand.u32 %s120, 1
          %s776 = scalar_lea.sflag [#allocation10], %s775
          %s777 = sand.u32 %s120, 1
          %s778 = smul.addr %s777, 16
          %s779 = scalar_lea.vmem [#allocation11], %s778
          %780 = dma.done %s776, 256
        $region80: #{tpu_custom_call.1} parent=75 // pred_fallthru
          _
        // Predicated region
        $region81: #{tpu_custom_call.1} parent=75 // pred_check
          %p781 = pneg %p161
        $region82: #{tpu_custom_call.1} parent=75 // pred_check_branch
          %783 = sbr.rel (%p781) target = $region84
        $region83: #{tpu_custom_call.1} parent=75 // pred_region
          %s784 = sand.u32 %s146, 1
          %s785 = scalar_lea.sflag [#allocation13], %s784
          %s786 = sand.u32 %s146, 1
          %s787 = smul.addr %s786, 16
          %s788 = scalar_lea.vmem [#allocation12], %s787
          %789 = dma.done %s785, 256
        $region84: #{tpu_custom_call.1} parent=75 // pred_fallthru
          _
      $region76: #{tpu_custom_call.1} parent=5 // pred_fallthru
        _
    $region6: #{tpu_custom_call.1} parent=1 // loop_footer
      %s28 = sadd.s32 1, %s24
    $region7: #{tpu_custom_call.1} parent=1 // loop_footer_branch
      %23 = sbr.rel target = $region3
    $region8: #{tpu_custom_call.1} parent=1 // loop_exit
      _
    %790 = vsyncpa [#allocation9], 1
    %s791 = scalar_lea.sflag [#allocation9], 1
    %792 = vsyncpa %s791, 1
    %793 = vsyncpa [#allocation10], 1
    %s794 = scalar_lea.sflag [#allocation10], 1
    %795 = vsyncpa %s794, 1
    %796 = vsyncpa [#allocation13], 1
    %s797 = scalar_lea.sflag [#allocation13], 1
    %798 = vsyncpa %s797, 1

</llo_original>
